<compile_context>
chip_gen: v5e
topology: v5e:2x2
jax: 0.10.0
libtpu: 0.0.40
codegen_flags: <defaults>
</compile_context>

<pallas_src>
import functools

import jax
import jax.numpy as jnp
import numpy as np
from jax.experimental import pallas as pl
from jax.experimental.pallas import tpu as pltpu


def _round_up(x, m):
    return ((x + m - 1) // m) * m


def _freq_linear_kernel(xr_ref, xi_ref, wrt_ref, wit_ref, wst_ref,
                        or_ref, oi_ref, accr_ref, acci_ref):
    k = pl.program_id(2)

    @pl.when(k == 0)
    def _():
        accr_ref[...] = jnp.zeros_like(accr_ref)
        acci_ref[...] = jnp.zeros_like(acci_ref)

    xr = xr_ref[...]                       # (tb, tk)
    xi = xi_ref[...]                       # (tb, tk)
    xs = xr + xi                           # VALU; free under MXU-bound schedule

    # Gauss 3-multiply complex matmul (weights already transposed to (tk, to)).
    t1 = jnp.dot(xr, wrt_ref[...], preferred_element_type=jnp.float32)
    t2 = jnp.dot(xi, wit_ref[...], preferred_element_type=jnp.float32)
    t3 = jnp.dot(xs, wst_ref[...], preferred_element_type=jnp.float32)

    accr_ref[...] += t1 - t2
    acci_ref[...] += t3 - t1 - t2

    @pl.when(k == pl.num_programs(2) - 1)
    def _():
        or_ref[...] = accr_ref[...]
        oi_ref[...] = acci_ref[...]


@functools.partial(jax.jit, static_argnames=("tb", "to", "tk", "compute_dtype"))
def frequency_linear(x_complex, w_complex, *, tb=256, to=512, tk=512,
                     compute_dtype=jnp.float32):
    """x_complex: (B, in_features) complex; w_complex: (out, in) complex."""
    B, In = x_complex.shape
    Out, In2 = w_complex.shape
    assert In == In2

    xr = jnp.real(x_complex).astype(jnp.float32)
    xi = jnp.imag(x_complex).astype(jnp.float32)
    wr = jnp.real(w_complex).astype(jnp.float32)
    wi = jnp.imag(w_complex).astype(jnp.float32)

    # Weight-only prep (done once, outside the kernel / hot loop):
    #   pre-transpose to (In, Out) and pre-combine (wr + wi) for the Gauss trick.
    wr_t = wr.T
    wi_t = wi.T
    ws_t = (wr + wi).T

    # --- tile sizes: (8,128)-aligned, clamped to the (padded) problem ----------------
    tb = _round_up(max(8, min(tb, _round_up(B, 8))), 8)
    to = _round_up(max(128, min(to, _round_up(Out, 128))), 128)
    tk = _round_up(max(128, min(tk, _round_up(In, 128))), 128)

    Bp = _round_up(B, tb)
    Outp = _round_up(Out, to)      # lane-dense output tiles (multiple of 128)
    Inp = _round_up(In, tk)        # MXU-aligned contraction dim

    def pad2(a, rows, cols):
        return jnp.pad(a, ((0, rows - a.shape[0]), (0, cols - a.shape[1])))

    xr_p = pad2(xr, Bp, Inp)
    xi_p = pad2(xi, Bp, Inp)
    wrt_p = pad2(wr_t, Inp, Outp)
    wit_p = pad2(wi_t, Inp, Outp)
    wst_p = pad2(ws_t, Inp, Outp)

    if compute_dtype != jnp.float32:
        # Optional bf16 MXU inputs (f32 accumulation preserved via preferred_element_type).
        xr_p = xr_p.astype(compute_dtype)
        xi_p = xi_p.astype(compute_dtype)
        wrt_p = wrt_p.astype(compute_dtype)
        wit_p = wit_p.astype(compute_dtype)
        wst_p = wst_p.astype(compute_dtype)

    grid = (Bp // tb, Outp // to, Inp // tk)

    x_spec = pl.BlockSpec((tb, tk), lambda b, o, k: (b, k))
    w_spec = pl.BlockSpec((tk, to), lambda b, o, k: (k, o))
    o_spec = pl.BlockSpec((tb, to), lambda b, o, k: (b, o))

    # TODO(synk): weight tiles are re-DMA'd per B-tile (standard (B,Out,K) matmul grid);
    # for huge B a (Out,K,B)-ordered variant with a wider accumulator would cut weight HBM traffic.
    out_r, out_i = pl.pallas_call(
        _freq_linear_kernel,
        out_shape=(
            jax.ShapeDtypeStruct((Bp, Outp), jnp.float32),
            jax.ShapeDtypeStruct((Bp, Outp), jnp.float32),
        ),
        grid_spec=pltpu.PrefetchScalarGridSpec(
            num_scalar_prefetch=0,
            grid=grid,
            in_specs=[x_spec, x_spec, w_spec, w_spec, w_spec],
            out_specs=[o_spec, o_spec],
            scratch_shapes=[
                pltpu.VMEM((tb, to), jnp.float32),   # real accumulator
                pltpu.VMEM((tb, to), jnp.float32),   # imag accumulator
            ],
        ),
        compiler_params=pltpu.CompilerParams(
            dimension_semantics=("parallel", "parallel", "arbitrary"),
            # ~11 MiB needed at default tiles; 48 MiB keeps headroom on every chip
            # (v7x physical VMEM is 64 MiB, v5e/v6e 128 MiB).
            vmem_limit_bytes=48 * 1024 * 1024,
        ),
    )(xr_p, xi_p, wrt_p, wit_p, wst_p)

    out_r = out_r[:B, :Out]
    out_i = out_i[:B, :Out]
    return jax.lax.complex(out_r, out_i).astype(jnp.complex64)


def make_filters(key, out_features, in_features):
    """He-style complex init (deterministic), mirroring he_complex_init():
    kaiming_uniform (fan_in, relu gain) on real & imag, then scale by sqrt(2/in)."""
    k1, k2 = jax.random.split(key)
    fan_in = in_features
    bound = np.sqrt(2.0) * np.sqrt(3.0 / fan_in)        # kaiming_uniform bound
    scale = np.sqrt(2.0 / fan_in)
    w_real = jax.random.uniform(k1, (out_features, in_features),
                                minval=-bound, maxval=bound, dtype=jnp.float32) * scale
    w_imag = jax.random.uniform(k2, (out_features, in_features),
                                minval=-bound, maxval=bound, dtype=jnp.float32) * scale
    return (w_real + 1j * w_imag).astype(jnp.complex64)


def _make_complex_input(key, b, n):
    xr = jax.random.normal(key, (b, n), dtype=jnp.float32)
    xi = jax.random.normal(jax.random.fold_in(key, 1), (b, n), dtype=jnp.float32)
    return (xr + 1j * xi).astype(jnp.complex64)


def _reference(x, filters):
    # Matches the PyTorch forward: (B,1,In) * (Out,In) summed over last axis.
    return jnp.sum(x[:, None, :] * filters[None, :, :], axis=-1)


if __name__ == "__main__":
    key = jax.random.PRNGKey(0)
    k_x, k_w, k_x2, k_w2 = jax.random.split(key, 4)

    # ---- test 1: module-sized shapes (single tile after padding) -------------------
    B, in_features, out_features = 8, 32, 16
    x = _make_complex_input(k_x, B, in_features)
    filters = make_filters(k_w, out_features, in_features)

    out = frequency_linear(x, filters)
    out = jax.block_until_ready(out)
    ref = _reference(x, filters)
    assert out.shape == (B, out_features)
    np.testing.assert_allclose(np.asarray(out), np.asarray(ref), rtol=1e-4, atol=1e-4)

    # ---- test 2: non-aligned shapes exercising padding + K accumulation ------------
    B2, in2, out2 = 16, 300, 200
    x2 = _make_complex_input(k_x2, B2, in2)
    filters2 = make_filters(k_w2, out2, in2)

    out2_val = frequency_linear(x2, filters2, tb=8, to=128, tk=128)  # grid (2, 2, 3)
    out2_val = jax.block_until_ready(out2_val)
    ref2 = _reference(x2, filters2)
    assert out2_val.shape == (B2, out2)
    np.testing.assert_allclose(np.asarray(out2_val), np.asarray(ref2), rtol=1e-4, atol=1e-4)

    print("KERNEL_OK")
</pallas_src>

<mosaic_0001>
module attributes {stable_mosaic.version = 11 : i64} {
  func.func @_freq_linear_kernel(%arg0: i32, %arg1: i32, %arg2: i32, %arg3: memref<8x128xf32, #tpu.memory_space<vmem>>, %arg4: memref<8x128xf32, #tpu.memory_space<vmem>>, %arg5: memref<128x128xf32, #tpu.memory_space<vmem>>, %arg6: memref<128x128xf32, #tpu.memory_space<vmem>>, %arg7: memref<128x128xf32, #tpu.memory_space<vmem>>, %arg8: memref<8x128xf32, #tpu.memory_space<vmem>>, %arg9: memref<8x128xf32, #tpu.memory_space<vmem>>, %arg10: memref<8x128xf32, #tpu.memory_space<vmem>>, %arg11: memref<8x128xf32, #tpu.memory_space<vmem>>) attributes {dimension_semantics = [#tpu.dimension_semantics<parallel>, #tpu.dimension_semantics<parallel>, #tpu.dimension_semantics<arbitrary>], iteration_bounds = array<i64: 1, 1, 1>, scalar_prefetch = 0 : i64, scratch_operands = 2 : i64, tpu.core_type = #tpu.core_type<tc>, window_params = [{transform_indices = @transform_0, window_bounds = array<i64: 8, 128>}, {transform_indices = @transform_1, window_bounds = array<i64: 8, 128>}, {transform_indices = @transform_2, window_bounds = array<i64: 128, 128>}, {transform_indices = @transform_3, window_bounds = array<i64: 128, 128>}, {transform_indices = @transform_4, window_bounds = array<i64: 128, 128>}, {transform_indices = @transform_5, window_bounds = array<i64: 8, 128>}, {transform_indices = @transform_6, window_bounds = array<i64: 8, 128>}]} {
    %c0_i32 = arith.constant 0 : i32
    %0 = arith.cmpi eq, %arg2, %c0_i32 : i32
    %1 = arith.extui %0 : i1 to i32
    %c0_i32_0 = arith.constant 0 : i32
    %2 = arith.cmpi ne, %1, %c0_i32_0 : i32
    scf.if %2 {
      %cst_22 = arith.constant 0.000000e+00 : f32
      %24 = vector.broadcast %cst_22 : f32 to vector<8x128xf32>
      %c0_23 = arith.constant 0 : index
      %c0_24 = arith.constant 0 : index
      %25 = vector.load %arg10[%c0_23, %c0_24] : memref<8x128xf32, #tpu.memory_space<vmem>>, vector<8x128xf32>
      tpu.vector_store %arg10[%c0_23, %c0_24], %24 {strides = array<i32>} : memref<8x128xf32, #tpu.memory_space<vmem>>, vector<8x128xf32>,
      %cst_25 = arith.constant 0.000000e+00 : f32
      %26 = vector.broadcast %cst_25 : f32 to vector<8x128xf32>
      %c0_26 = arith.constant 0 : index
      %c0_27 = arith.constant 0 : index
      %27 = vector.load %arg11[%c0_26, %c0_27] : memref<8x128xf32, #tpu.memory_space<vmem>>, vector<8x128xf32>
      tpu.vector_store %arg11[%c0_26, %c0_27], %26 {strides = array<i32>} : memref<8x128xf32, #tpu.memory_space<vmem>>, vector<8x128xf32>,
    } else {
    }
    %c0 = arith.constant 0 : index
    %c0_1 = arith.constant 0 : index
    %3 = vector.load %arg3[%c0, %c0_1] : memref<8x128xf32, #tpu.memory_space<vmem>>, vector<8x128xf32>
    %c0_2 = arith.constant 0 : index
    %c0_3 = arith.constant 0 : index
    %4 = vector.load %arg4[%c0_2, %c0_3] : memref<8x128xf32, #tpu.memory_space<vmem>>, vector<8x128xf32>
    %5 = arith.addf %3, %4 : vector<8x128xf32>
    %c0_4 = arith.constant 0 : index
    %c0_5 = arith.constant 0 : index
    %6 = vector.load %arg5[%c0_4, %c0_5] : memref<128x128xf32, #tpu.memory_space<vmem>>, vector<128x128xf32>
    %cst = arith.constant dense<0.000000e+00> : vector<8x128xf32>
    %7 = tpu.matmul %3, %6, %cst {dimension_numbers = #tpu.dot_dimension_numbers<[1], [0], [0], [1], [0, 0, 1, 1], [], []>} : vector<8x128xf32>, vector<128x128xf32>, vector<8x128xf32> -> vector<8x128xf32>
    %c0_6 = arith.constant 0 : index
    %c0_7 = arith.constant 0 : index
    %8 = vector.load %arg6[%c0_6, %c0_7] : memref<128x128xf32, #tpu.memory_space<vmem>>, vector<128x128xf32>
    %cst_8 = arith.constant dense<0.000000e+00> : vector<8x128xf32>
    %9 = tpu.matmul %4, %8, %cst_8 {dimension_numbers = #tpu.dot_dimension_numbers<[1], [0], [0], [1], [0, 0, 1, 1], [], []>} : vector<8x128xf32>, vector<128x128xf32>, vector<8x128xf32> -> vector<8x128xf32>
    %c0_9 = arith.constant 0 : index
    %c0_10 = arith.constant 0 : index
    %10 = vector.load %arg7[%c0_9, %c0_10] : memref<128x128xf32, #tpu.memory_space<vmem>>, vector<128x128xf32>
    %cst_11 = arith.constant dense<0.000000e+00> : vector<8x128xf32>
    %11 = tpu.matmul %5, %10, %cst_11 {dimension_numbers = #tpu.dot_dimension_numbers<[1], [0], [0], [1], [0, 0, 1, 1], [], []>} : vector<8x128xf32>, vector<128x128xf32>, vector<8x128xf32> -> vector<8x128xf32>
    %c0_12 = arith.constant 0 : index
    %c0_13 = arith.constant 0 : index
    %12 = vector.load %arg10[%c0_12, %c0_13] : memref<8x128xf32, #tpu.memory_space<vmem>>, vector<8x128xf32>
    %13 = arith.subf %7, %9 : vector<8x128xf32>
    %14 = arith.addf %12, %13 : vector<8x128xf32>
    %c0_14 = arith.constant 0 : index
    %c0_15 = arith.constant 0 : index
    %15 = vector.load %arg10[%c0_14, %c0_15] : memref<8x128xf32, #tpu.memory_space<vmem>>, vector<8x128xf32>
    tpu.vector_store %arg10[%c0_14, %c0_15], %14 {strides = array<i32>} : memref<8x128xf32, #tpu.memory_space<vmem>>, vector<8x128xf32>,
    %c0_16 = arith.constant 0 : index
    %c0_17 = arith.constant 0 : index
    %16 = vector.load %arg11[%c0_16, %c0_17] : memref<8x128xf32, #tpu.memory_space<vmem>>, vector<8x128xf32>
    %17 = arith.subf %11, %7 : vector<8x128xf32>
    %18 = arith.subf %17, %9 : vector<8x128xf32>
    %19 = arith.addf %16, %18 : vector<8x128xf32>
    %c0_18 = arith.constant 0 : index
    %c0_19 = arith.constant 0 : index
    %20 = vector.load %arg11[%c0_18, %c0_19] : memref<8x128xf32, #tpu.memory_space<vmem>>, vector<8x128xf32>
    tpu.vector_store %arg11[%c0_18, %c0_19], %19 {strides = array<i32>} : memref<8x128xf32, #tpu.memory_space<vmem>>, vector<8x128xf32>,
    %c0_i32_20 = arith.constant 0 : i32
    %21 = arith.cmpi eq, %arg2, %c0_i32_20 : i32
    %22 = arith.extui %21 : i1 to i32
    %c0_i32_21 = arith.constant 0 : i32
    %23 = arith.cmpi ne, %22, %c0_i32_21 : i32
    scf.if %23 {
      %c0_22 = arith.constant 0 : index
      %c0_23 = arith.constant 0 : index
      %24 = vector.load %arg10[%c0_22, %c0_23] : memref<8x128xf32, #tpu.memory_space<vmem>>, vector<8x128xf32>
      %c0_24 = arith.constant 0 : index
      %c0_25 = arith.constant 0 : index
      %25 = vector.load %arg8[%c0_24, %c0_25] : memref<8x128xf32, #tpu.memory_space<vmem>>, vector<8x128xf32>
      tpu.vector_store %arg8[%c0_24, %c0_25], %24 {strides = array<i32>} : memref<8x128xf32, #tpu.memory_space<vmem>>, vector<8x128xf32>,
      %c0_26 = arith.constant 0 : index
      %c0_27 = arith.constant 0 : index
      %26 = vector.load %arg11[%c0_26, %c0_27] : memref<8x128xf32, #tpu.memory_space<vmem>>, vector<8x128xf32>
      %c0_28 = arith.constant 0 : index
      %c0_29 = arith.constant 0 : index
      %27 = vector.load %arg9[%c0_28, %c0_29] : memref<8x128xf32, #tpu.memory_space<vmem>>, vector<8x128xf32>
      tpu.vector_store %arg9[%c0_28, %c0_29], %26 {strides = array<i32>} : memref<8x128xf32, #tpu.memory_space<vmem>>, vector<8x128xf32>,
    } else {
    }
    return
  }
  func.func @transform_0(%arg0: i32, %arg1: i32, %arg2: i32) -> (i32, i32) {
    %c0_i32 = arith.constant 0 : i32
    return %arg0, %arg2 : i32, i32
  }
  func.func @transform_1(%arg0: i32, %arg1: i32, %arg2: i32) -> (i32, i32) {
    %c0_i32 = arith.constant 0 : i32
    return %arg0, %arg2 : i32, i32
  }
  func.func @transform_2(%arg0: i32, %arg1: i32, %arg2: i32) -> (i32, i32) {
    %c0_i32 = arith.constant 0 : i32
    return %arg2, %arg1 : i32, i32
  }
  func.func @transform_3(%arg0: i32, %arg1: i32, %arg2: i32) -> (i32, i32) {
    %c0_i32 = arith.constant 0 : i32
    return %arg2, %arg1 : i32, i32
  }
  func.func @transform_4(%arg0: i32, %arg1: i32, %arg2: i32) -> (i32, i32) {
    %c0_i32 = arith.constant 0 : i32
    return %arg2, %arg1 : i32, i32
  }
  func.func @transform_5(%arg0: i32, %arg1: i32, %arg2: i32) -> (i32, i32) {
    %c0_i32 = arith.constant 0 : i32
    return %arg0, %arg1 : i32, i32
  }
  func.func @transform_6(%arg0: i32, %arg1: i32, %arg2: i32) -> (i32, i32) {
    %c0_i32 = arith.constant 0 : i32
    return %arg0, %arg1 : i32, i32
  }
}

</mosaic_0001>

<llo_original>
// kernel: custom-call.3
$region0: #{custom-call.3}
  %s0 = inlined_call_operand.vmem [shape: c64[16,32], index: 0, kind: input, shape index: {}]
  %s1 = inlined_call_operand.vmem [shape: f32[16,32], index: 1, kind: output, shape index: {}]
  %s2 = scalar_lea.vmem %s0, 32
  %v3 = vld [vmem:[%s2] sm:$0xff]
  %4 = vst [vmem:[%s1] sm:$0xff] %v3
  %s5 = scalar_lea.vmem %s1, 8
  %s6 = scalar_lea.vmem %s2, 8
  %v7 = vld [vmem:[%s6] sm:$0xff]
  %8 = vst [vmem:[%s5] sm:$0xff] %v7
  %s9 = scalar_lea.vmem %s1, 16
  %s10 = scalar_lea.vmem %s2, 16
  %v11 = vld [vmem:[%s10] sm:$0xff]
  %12 = vst [vmem:[%s9] sm:$0xff] %v11
  %s13 = scalar_lea.vmem %s1, 24
  %s14 = scalar_lea.vmem %s2, 24
  %v15 = vld [vmem:[%s14] sm:$0xff]
  %16 = vst [vmem:[%s13] sm:$0xff] %v15

// kernel: custom-call.2
$region0: #{custom-call.2}
  %s0 = inlined_call_operand.vmem [shape: c64[16,32], index: 0, kind: input, shape index: {}]
  %s1 = inlined_call_operand.vmem [shape: f32[16,32], index: 1, kind: output, shape index: {}]
  %v2 = vld [vmem:[%s0] sm:$0xff]
  %3 = vst [vmem:[%s1] sm:$0xff] %v2
  %s4 = scalar_lea.vmem %s1, 8
  %s5 = scalar_lea.vmem %s0, 8
  %v6 = vld [vmem:[%s5] sm:$0xff]
  %7 = vst [vmem:[%s4] sm:$0xff] %v6
  %s8 = scalar_lea.vmem %s1, 16
  %s9 = scalar_lea.vmem %s0, 16
  %v10 = vld [vmem:[%s9] sm:$0xff]
  %11 = vst [vmem:[%s8] sm:$0xff] %v10
  %s12 = scalar_lea.vmem %s1, 24
  %s13 = scalar_lea.vmem %s0, 24
  %v14 = vld [vmem:[%s13] sm:$0xff]
  %15 = vst [vmem:[%s12] sm:$0xff] %v14

// kernel: custom-call
$region0: #{custom-call}
  %s0 = inlined_call_operand.hbm [shape: c64[8,32], index: 0, kind: input, shape index: {}]
  %s1 = inlined_call_operand.vmem [shape: f32[8,32], index: 1, kind: output, shape index: {}]
  $region1: #{custom-call} parent=0
    #allocation0 [shape = 's32[1]{0}', space=sflag, size = 0x4, scoped, tag = 'scoped memory for custom-call']
    %2 = vsyncpa [#allocation0], 0
    %s4 = sshll.u32 %s0, 4
    %s5 = int_to_ptr.hbm [resolvable:$true] %s4
    %s6 = sshll.u32 %s1, 4
    %s7 = int_to_ptr.vmem [resolvable:$true] %s6
    %9 = dma.hbm_to_vmem [thread:$0]  %s5, 128, %s7, [#allocation0]
    %11 = dma.done [#allocation0], 128
    %12 = vsyncpa [#allocation0], 1

// kernel: custom-call.1
$region0: #{custom-call.1}
  %s0 = inlined_call_operand.hbm [shape: c64[8,32], index: 0, kind: input, shape index: {}]
  %s1 = inlined_call_operand.vmem [shape: f32[8,32], index: 1, kind: output, shape index: {}]
  %s2 = scalar_lea.hbm %s0, 8
  $region1: #{custom-call.1} parent=0
    #allocation0 [shape = 's32[1]{0}', space=sflag, size = 0x4, scoped, tag = 'scoped memory for custom-call.1']
    %3 = vsyncpa [#allocation0], 0
    %s5 = sshll.u32 %s2, 4
    %s6 = int_to_ptr.hbm [resolvable:$true] %s5
    %s7 = sshll.u32 %s1, 4
    %s8 = int_to_ptr.vmem [resolvable:$true] %s7
    %10 = dma.hbm_to_vmem [thread:$0]  %s6, 128, %s8, [#allocation0]
    %12 = dma.done [#allocation0], 128
    %13 = vsyncpa [#allocation0], 1

// kernel: custom-call.4
$region0: #{custom-call.4}
  %s0 = inlined_call_operand.vmem [shape: f32[8,16], index: 0, kind: input, shape index: {}]
  %s1 = inlined_call_operand.vmem [shape: f32[8,16], index: 1, kind: input, shape index: {}]
  %s2 = inlined_call_operand.hbm [shape: c64[8,16], index: 2, kind: output, shape index: {}]
  %s3 = scalar_lea.hbm %s2, 8
  $region1: #{custom-call.4} parent=0
    #allocation0 [shape = 's32[1]{0}', space=sflag, size = 0x4, scoped, tag = 'scoped memory for custom-call.4']
    %4 = vsyncpa [#allocation0], 0
    %s6 = sshll.u32 %s0, 4
    %s7 = int_to_ptr.vmem [resolvable:$true] %s6
    %s8 = sshll.u32 %s2, 4
    %s9 = int_to_ptr.hbm [resolvable:$true] %s8
    %11 = dma.vmem_to_hbm [thread:$0]  %s7, 128, %s9, [#allocation0]
    %13 = dma.done [#allocation0], 128
    %14 = vsyncpa [#allocation0], 1
  $region2: #{custom-call.4} parent=0
    #allocation1 [shape = 's32[1]{0}', space=sflag, size = 0x4, scoped, tag = 'scoped memory for custom-call.4']
    %15 = vsyncpa [#allocation1], 0
    %s17 = sshll.u32 %s1, 4
    %s18 = int_to_ptr.vmem [resolvable:$true] %s17
    %s19 = sshll.u32 %s3, 4
    %s20 = int_to_ptr.hbm [resolvable:$true] %s19
    %22 = dma.vmem_to_hbm [thread:$0]  %s18, 128, %s20, [#allocation1]
    %24 = dma.done [#allocation1], 128
    %25 = vsyncpa [#allocation1], 1

// kernel: frequency_linear.1
$region0: #{frequency_linear.1}
  #allocation0 [shape = 'u32[]', space=smem, size = 0x4, offset = 0x4, fixed_abs, tag = 'smem constant byte address 0x4 - core index']
  #allocation1 [shape = 'u32[72,128]{1,0:T(1,128)}', space=vmem, size = 0x9000, scoped, tag = 'internal scratch']
  #allocation2 [shape = 'f32[8,128]{1,0:T(8,128)}', space=vmem, size = 0x1000, scoped, tag = 'scratch operand']
  #allocation3 [shape = 'f32[8,128]{1,0:T(8,128)}', space=vmem, size = 0x1000, scoped, tag = 'scratch operand']
  %s0 = inlined_call_operand.vmem [shape: f32[8,128], index: 0, kind: input, shape index: {}]
  %s1 = inlined_call_operand.vmem [shape: f32[8,128], index: 1, kind: input, shape index: {}]
  %s2 = inlined_call_operand.vmem [shape: f32[128,128], index: 2, kind: input, shape index: {}]
  %s3 = inlined_call_operand.vmem [shape: f32[128,128], index: 3, kind: input, shape index: {}]
  %s4 = inlined_call_operand.vmem [shape: f32[128,128], index: 4, kind: input, shape index: {}]
  %s5 = inlined_call_operand.vmem [shape: f32[8,128], index: 5, kind: output, shape index: {0}]
  %s6 = inlined_call_operand.vmem [shape: f32[8,128], index: 6, kind: output, shape index: {1}]
  %7 = xla_tuple %s5, %s6
  %s8 = sld [smem:[#allocation0]]
  $region46: #{frequency_linear.1} parent=0
    _
  %s10 = ssub.s32 1, %s8
  %s11 = scalar_select 0, %s10, %s8
  // Predicated region
  $region2: #{frequency_linear.1} parent=0 // pred_check
    _
  $region3: #{frequency_linear.1} parent=0 // pred_check_branch
    %13 = sbr.rel (0) target = $region5
  $region4: #{frequency_linear.1} parent=0 // pred_region
    _
  $region5: #{frequency_linear.1} parent=0 // pred_fallthru
    _
  // Predicated region
  $region6: #{frequency_linear.1} parent=0 // pred_check
    _
  $region7: #{frequency_linear.1} parent=0 // pred_check_branch
    %15 = sbr.rel (0) target = $region9
  $region8: #{frequency_linear.1} parent=0 // pred_region
    _
  $region9: #{frequency_linear.1} parent=0 // pred_fallthru
    _
  // Predicated region
  $region10: #{frequency_linear.1} parent=0 // pred_check
    _
  $region11: #{frequency_linear.1} parent=0 // pred_check_branch
    %17 = sbr.rel (0) target = $region13
  $region12: #{frequency_linear.1} parent=0 // pred_region
    _
  $region13: #{frequency_linear.1} parent=0 // pred_fallthru
    _
  // Predicated region
  $region14: #{frequency_linear.1} parent=0 // pred_check
    _
  $region15: #{frequency_linear.1} parent=0 // pred_check_branch
    %19 = sbr.rel (0) target = $region17
  $region16: #{frequency_linear.1} parent=0 // pred_region
    _
  $region17: #{frequency_linear.1} parent=0 // pred_fallthru
    _
  // Predicated region
  $region18: #{frequency_linear.1} parent=0 // pred_check
    _
  $region19: #{frequency_linear.1} parent=0 // pred_check_branch
    %21 = sbr.rel (0) target = $region21
  $region20: #{frequency_linear.1} parent=0 // pred_region
    _
  $region21: #{frequency_linear.1} parent=0 // pred_fallthru
    _
  %p22 = scmp.eq.s32.totalorder 0, 0
  // Predicated region
  $region22: #{frequency_linear.1} parent=0 // pred_check
    %p23 = pneg %p22
  $region23: #{frequency_linear.1} parent=0 // pred_check_branch
    %25 = sbr.rel (%p23) target = $region25
  $region24: #{frequency_linear.1} parent=0 // pred_region
    %26 = vst [vmem:[#allocation2] sm:$0xff] 0.0
    %27 = vst [vmem:[#allocation3] sm:$0xff] 0.0
  $region25: #{frequency_linear.1} parent=0 // pred_fallthru
    _
  %v28 = vld [vmem:[%s0] sm:$0xff]
  %v29 = vld [vmem:[%s1] sm:$0xff]
  %v30 = vadd.f32 %v28, %v29
  %v31 = vld [vmem:[%s2] sm:$0xff]
  %v32 = vld [vmem:[%s2 + $0x8] sm:$0xff]
  %v33 = vld [vmem:[%s2 + $0x10] sm:$0xff]
  %v34 = vld [vmem:[%s2 + $0x18] sm:$0xff]
  %v35 = vld [vmem:[%s2 + $0x20] sm:$0xff]
  %v36 = vld [vmem:[%s2 + $0x28] sm:$0xff]
  %v37 = vld [vmem:[%s2 + $0x30] sm:$0xff]
  %v38 = vld [vmem:[%s2 + $0x38] sm:$0xff]
  %v39 = vld [vmem:[%s2 + $0x40] sm:$0xff]
  %v40 = vld [vmem:[%s2 + $0x48] sm:$0xff]
  %v41 = vld [vmem:[%s2 + $0x50] sm:$0xff]
  %v42 = vld [vmem:[%s2 + $0x58] sm:$0xff]
  %v43 = vld [vmem:[%s2 + $0x60] sm:$0xff]
  %v44 = vld [vmem:[%s2 + $0x68] sm:$0xff]
  %v45 = vld [vmem:[%s2 + $0x70] sm:$0xff]
  %v46 = vld [vmem:[%s2 + $0x78] sm:$0xff]
  %47 = vmatpush.msra.mxu0 %v46
  %48 = vmatpush.msra.mxu0 %v45
  %49 = vmatpush.msra.mxu0 %v44
  %50 = vmatpush.msra.mxu0 %v43
  %51 = vmatpush.msra.mxu0 %v42
  %52 = vmatpush.msra.mxu0 %v41
  %53 = vmatpush.msra.mxu0 %v40
  %54 = vmatpush.msra.mxu0 %v39
  %55 = vmatpush.msra.mxu0 %v38
  %56 = vmatpush.msra.mxu0 %v37
  %57 = vmatpush.msra.mxu0 %v36
  %58 = vmatpush.msra.mxu0 %v35
  %59 = vmatpush.msra.mxu0 %v34
  %60 = vmatpush.msra.mxu0 %v33
  %61 = vmatpush.msra.mxu0 %v32
  %62 = vmatpush.msra.mxu0 %v31
  %63 = vmatmul.f32.gmra.mxu0 %v28
  %v64 = vpop.f32.mrf.mxu0
  %v65 = vadd.f32 0.0, %v64
  %66 = vdwg.mxu0
  %v67 = vld [vmem:[%s3] sm:$0xff]
  %v68 = vld [vmem:[%s3 + $0x8] sm:$0xff]
  %v69 = vld [vmem:[%s3 + $0x10] sm:$0xff]
  %v70 = vld [vmem:[%s3 + $0x18] sm:$0xff]
  %v71 = vld [vmem:[%s3 + $0x20] sm:$0xff]
  %v72 = vld [vmem:[%s3 + $0x28] sm:$0xff]
  %v73 = vld [vmem:[%s3 + $0x30] sm:$0xff]
  %v74 = vld [vmem:[%s3 + $0x38] sm:$0xff]
  %v75 = vld [vmem:[%s3 + $0x40] sm:$0xff]
  %v76 = vld [vmem:[%s3 + $0x48] sm:$0xff]
  %v77 = vld [vmem:[%s3 + $0x50] sm:$0xff]
  %v78 = vld [vmem:[%s3 + $0x58] sm:$0xff]
  %v79 = vld [vmem:[%s3 + $0x60] sm:$0xff]
  %v80 = vld [vmem:[%s3 + $0x68] sm:$0xff]
  %v81 = vld [vmem:[%s3 + $0x70] sm:$0xff]
  %v82 = vld [vmem:[%s3 + $0x78] sm:$0xff]
  %83 = vmatpush.msra.mxu0 %v82
  %84 = vmatpush.msra.mxu0 %v81
  %85 = vmatpush.msra.mxu0 %v80
  %86 = vmatpush.msra.mxu0 %v79
  %87 = vmatpush.msra.mxu0 %v78
  %88 = vmatpush.msra.mxu0 %v77
  %89 = vmatpush.msra.mxu0 %v76
  %90 = vmatpush.msra.mxu0 %v75
  %91 = vmatpush.msra.mxu0 %v74
  %92 = vmatpush.msra.mxu0 %v73
  %93 = vmatpush.msra.mxu0 %v72
  %94 = vmatpush.msra.mxu0 %v71
  %95 = vmatpush.msra.mxu0 %v70
  %96 = vmatpush.msra.mxu0 %v69
  %97 = vmatpush.msra.mxu0 %v68
  %98 = vmatpush.msra.mxu0 %v67
  %99 = vmatmul.f32.gmra.mxu0 %v29
  %v100 = vpop.f32.mrf.mxu0
  %v101 = vadd.f32 0.0, %v100
  %102 = vdwg.mxu0
  %v103 = vld [vmem:[%s4] sm:$0xff]
  %v104 = vld [vmem:[%s4 + $0x8] sm:$0xff]
  %v105 = vld [vmem:[%s4 + $0x10] sm:$0xff]
  %v106 = vld [vmem:[%s4 + $0x18] sm:$0xff]
  %v107 = vld [vmem:[%s4 + $0x20] sm:$0xff]
  %v108 = vld [vmem:[%s4 + $0x28] sm:$0xff]
  %v109 = vld [vmem:[%s4 + $0x30] sm:$0xff]
  %v110 = vld [vmem:[%s4 + $0x38] sm:$0xff]
  %v111 = vld [vmem:[%s4 + $0x40] sm:$0xff]
  %v112 = vld [vmem:[%s4 + $0x48] sm:$0xff]
  %v113 = vld [vmem:[%s4 + $0x50] sm:$0xff]
  %v114 = vld [vmem:[%s4 + $0x58] sm:$0xff]
  %v115 = vld [vmem:[%s4 + $0x60] sm:$0xff]
  %v116 = vld [vmem:[%s4 + $0x68] sm:$0xff]
  %v117 = vld [vmem:[%s4 + $0x70] sm:$0xff]
  %v118 = vld [vmem:[%s4 + $0x78] sm:$0xff]
  %119 = vmatpush.msra.mxu0 %v118
  %120 = vmatpush.msra.mxu0 %v117
  %121 = vmatpush.msra.mxu0 %v116
  %122 = vmatpush.msra.mxu0 %v115
  %123 = vmatpush.msra.mxu0 %v114
  %124 = vmatpush.msra.mxu0 %v113
  %125 = vmatpush.msra.mxu0 %v112
  %126 = vmatpush.msra.mxu0 %v111
  %127 = vmatpush.msra.mxu0 %v110
  %128 = vmatpush.msra.mxu0 %v109
  %129 = vmatpush.msra.mxu0 %v108
  %130 = vmatpush.msra.mxu0 %v107
  %131 = vmatpush.msra.mxu0 %v106
  %132 = vmatpush.msra.mxu0 %v105
  %133 = vmatpush.msra.mxu0 %v104
  %134 = vmatpush.msra.mxu0 %v103
  %135 = vmatmul.f32.gmra.mxu0 %v30
  %v136 = vpop.f32.mrf.mxu0
  %v137 = vadd.f32 0.0, %v136
  %138 = vdwg.mxu0
  %v139 = vld [vmem:[#allocation2] sm:$0xff]
  %v140 = vsub.f32 %v65, %v101
  %v141 = vadd.f32 %v139, %v140
  %142 = vst [vmem:[#allocation2] sm:$0xff] %v141
  %v143 = vld [vmem:[#allocation3] sm:$0xff]
  %v144 = vsub.f32 %v137, %v65
  %v145 = vsub.f32 %v144, %v101
  %v146 = vadd.f32 %v143, %v145
  %147 = vst [vmem:[#allocation3] sm:$0xff] %v146
  // Predicated region
  $region26: #{frequency_linear.1} parent=0 // pred_check
    %p148 = pneg %p22
  $region27: #{frequency_linear.1} parent=0 // pred_check_branch
    %150 = sbr.rel (%p148) target = $region29
  $region28: #{frequency_linear.1} parent=0 // pred_region
    %v151 = vld [vmem:[#allocation2] sm:$0xff]
    %152 = vst [vmem:[%s5] sm:$0xff] %v151
    %v153 = vld [vmem:[#allocation3] sm:$0xff]
    %154 = vst [vmem:[%s6] sm:$0xff] %v153
  $region29: #{frequency_linear.1} parent=0 // pred_fallthru
    _
  // Predicated region
  $region30: #{frequency_linear.1} parent=0 // pred_check
    _
  $region31: #{frequency_linear.1} parent=0 // pred_check_branch
    %156 = sbr.rel (0) target = $region33
  $region32: #{frequency_linear.1} parent=0 // pred_region
    _
  $region33: #{frequency_linear.1} parent=0 // pred_fallthru
    _
  // Predicated region
  $region34: #{frequency_linear.1} parent=0 // pred_check
    _
  $region35: #{frequency_linear.1} parent=0 // pred_check_branch
    %158 = sbr.rel (0) target = $region37
  $region36: #{frequency_linear.1} parent=0 // pred_region
    _
  $region37: #{frequency_linear.1} parent=0 // pred_fallthru
    _
  // Predicated region
  $region38: #{frequency_linear.1} parent=0 // pred_check
    _
  $region39: #{frequency_linear.1} parent=0 // pred_check_branch
    %160 = sbr.rel (0) target = $region41
  $region40: #{frequency_linear.1} parent=0 // pred_region
    _
  $region41: #{frequency_linear.1} parent=0 // pred_fallthru
    _
  // Predicated region
  $region42: #{frequency_linear.1} parent=0 // pred_check
    _
  $region43: #{frequency_linear.1} parent=0 // pred_check_branch
    %162 = sbr.rel (0) target = $region45
  $region44: #{frequency_linear.1} parent=0 // pred_region
    _
  $region45: #{frequency_linear.1} parent=0 // pred_fallthru
    _

</llo_original>
